<compile_context>
chip_gen: v7x
topology: tpu7x:2x2x1
jax: 0.10.0
libtpu: 0.0.40
codegen_flags: <defaults>
</compile_context>

<pallas_src>
import jax
import jax.numpy as jnp
from jax import lax
from jax.experimental import pallas as pl
from jax.experimental.pallas import tpu as pltpu

__max_value__ = 1.0
__min_value__ = 1.0

_P = 8  # original rows packed per lane-dense row (8*K=128 lanes in, 8*N=256 out)


def _round_up(x, m):
    return ((x + m - 1) // m) * m


def _linear_clamp_kernel(x_ref, w_ref, b_ref, o_ref):
    # x_ref: (tmp, P*K), w_ref: (P*N, P*K), b_ref: (1, P*N), o_ref: (tmp, P*N)
    # Contract the last dims of x and w (weight kept in (out, in) layout; no
    # wrapper-side transpose needed).
    y = lax.dot_general(
        x_ref[...], w_ref[...],
        dimension_numbers=(((1,), (1,)), ((), ())),
        preferred_element_type=jnp.float32,
    )
    y = y + b_ref[...]                      # bias broadcast over rows
    y = jnp.minimum(y, __max_value__)       # torch.clamp_max(v1, __max_value__)
    # TODO(synk): torch.clamp(__min_value__ + v2) with no bounds raises in
    # PyTorch (this spec is a jit_fail case); we treat it as identity and keep
    # the `__min_value__ + v2` add, matching the previous accepted semantics.
    y = __min_value__ + y
    o_ref[...] = y


def linear_clamp(x, weight, bias, *, tm=4096):
    """x: (B, C, H, K); weight: (N, K); bias: (N,). Returns (B, C, H, N)."""
    B, C, H, K = x.shape
    N = weight.shape[0]
    M = B * C * H

    # ---- packed-domain sizing -------------------------------------------
    Mp = pl.cdiv(M, _P)                       # packed rows needed
    # Large tiles for streaming efficiency, but keep grid >= 2 when possible
    # so v7x's two TensorCores both get work.
    tmp = max(8, min(max(tm // _P, 8), _round_up(pl.cdiv(Mp, 2), 8)))
    tmp = _round_up(tmp, 8)
    grid = pl.cdiv(Mp, tmp)
    Mp_pad = grid * tmp
    M_pad = Mp_pad * _P

    # Double-buffered VMEM footprint (f32): stay far under the 32 MiB scoped
    # default (and v7x's 64 MiB physical).
    vmem_bytes = 4 * (2 * tmp * (_P * K + _P * N) + 2 * (_P * N) * (_P * K) + 2 * _P * N)
    assert vmem_bytes < (24 << 20), "row tile too large for VMEM"

    # ---- wrapper-side packing (byte-identical reshapes + tiny constants) --
    x2d = x.reshape(M, K).astype(jnp.float32)
    if M_pad != M:
        x2d = jnp.pad(x2d, ((0, M_pad - M), (0, 0)))
    x_wide = x2d.reshape(Mp_pad, _P * K)                       # (Mp_pad, 128)

    w32 = weight.astype(jnp.float32)
    w_wide = jnp.kron(jnp.eye(_P, dtype=jnp.float32), w32)     # (P*N, P*K) block-diag
    b_wide = jnp.tile(bias.astype(jnp.float32).reshape(1, N), (1, _P))  # (1, P*N)

    out_wide = pl.pallas_call(
        _linear_clamp_kernel,
        out_shape=jax.ShapeDtypeStruct((Mp_pad, _P * N), jnp.float32),
        grid_spec=pltpu.PrefetchScalarGridSpec(
            num_scalar_prefetch=0,
            grid=(grid,),
            in_specs=[
                pl.BlockSpec((tmp, _P * K), lambda i: (i, 0)),
                pl.BlockSpec((_P * N, _P * K), lambda i: (0, 0)),  # resident
                pl.BlockSpec((1, _P * N), lambda i: (0, 0)),       # resident
            ],
            out_specs=pl.BlockSpec((tmp, _P * N), lambda i: (i, 0)),
        ),
        compiler_params=pltpu.CompilerParams(
            dimension_semantics=("parallel",),
        ),
    )(x_wide, w_wide, b_wide)

    out2d = out_wide.reshape(M_pad, N)[:M]
    return out2d.reshape(B, C, H, N)


if __name__ == "__main__":
    key = jax.random.PRNGKey(0)
    kx, kw, kb = jax.random.split(key, 3)

    # Small shapes consistent with linear over the last dim of an NCHW-ish tensor.
    B, C, H, K = 2, 4, 16, 16
    N = 32

    x = jax.random.normal(kx, (B, C, H, K), dtype=jnp.float32)
    weight = jax.random.normal(kw, (N, K), dtype=jnp.float32) * 0.1
    bias = jax.random.normal(kb, (N,), dtype=jnp.float32) * 0.1

    out = linear_clamp(x, weight, bias)
    jax.block_until_ready(out)

    # Reference check in plain JAX.
    ref = jnp.einsum("bchk,nk->bchn", x, weight) + bias
    ref = jnp.minimum(ref, __max_value__)
    ref = __min_value__ + ref
    assert out.shape == ref.shape
    assert jnp.allclose(out, ref, atol=1e-4, rtol=1e-4)

    print("KERNEL_OK")
</pallas_src>

<mosaic_0001>
module attributes {stable_mosaic.version = 11 : i64} {
  func.func @_linear_clamp_kernel(%arg0: i32, %arg1: memref<8x128xf32, #tpu.memory_space<vmem>>, %arg2: memref<256x128xf32, #tpu.memory_space<vmem>>, %arg3: memref<1x256xf32, #tpu.memory_space<vmem>>, %arg4: memref<8x256xf32, #tpu.memory_space<vmem>>) attributes {dimension_semantics = [#tpu.dimension_semantics<parallel>], iteration_bounds = array<i64: 2>, scalar_prefetch = 0 : i64, scratch_operands = 0 : i64, tpu.core_type = #tpu.core_type<tc>, window_params = [{transform_indices = @transform_0, window_bounds = array<i64: 8, 128>}, {pipeline_mode = #tpu.pipeline_mode<synchronous>, transform_indices = @transform_1, window_bounds = array<i64: 256, 128>}, {pipeline_mode = #tpu.pipeline_mode<synchronous>, transform_indices = @transform_2, window_bounds = array<i64: 1, 256>}, {transform_indices = @transform_3, window_bounds = array<i64: 8, 256>}]} {
    %c0 = arith.constant 0 : index
    %c0_0 = arith.constant 0 : index
    %0 = vector.load %arg1[%c0, %c0_0] : memref<8x128xf32, #tpu.memory_space<vmem>>, vector<8x128xf32>
    %c0_1 = arith.constant 0 : index
    %c0_2 = arith.constant 0 : index
    %1 = vector.load %arg2[%c0_1, %c0_2] : memref<256x128xf32, #tpu.memory_space<vmem>>, vector<256x128xf32>
    %cst = arith.constant dense<0.000000e+00> : vector<8x256xf32>
    %2 = tpu.matmul %0, %1, %cst {dimension_numbers = #tpu.dot_dimension_numbers<[1], [1], [0], [0], [0, 0, 1, 0], [], []>} : vector<8x128xf32>, vector<256x128xf32>, vector<8x256xf32> -> vector<8x256xf32>
    %c0_3 = arith.constant 0 : index
    %c0_4 = arith.constant 0 : index
    %3 = vector.load %arg3[%c0_3, %c0_4] : memref<1x256xf32, #tpu.memory_space<vmem>>, vector<1x256xf32>
    %4 = vector.broadcast %3 : vector<1x256xf32> to vector<8x256xf32>
    %5 = arith.addf %2, %4 : vector<8x256xf32>
    %cst_5 = arith.constant 1.000000e+00 : f32
    %6 = vector.broadcast %cst_5 : f32 to vector<8x256xf32>
    %7 = arith.minimumf %5, %6 : vector<8x256xf32>
    %cst_6 = arith.constant 1.000000e+00 : f32
    %8 = vector.broadcast %cst_6 : f32 to vector<8x256xf32>
    %9 = arith.addf %8, %7 : vector<8x256xf32>
    %c0_7 = arith.constant 0 : index
    %c0_8 = arith.constant 0 : index
    %10 = vector.load %arg4[%c0_7, %c0_8] : memref<8x256xf32, #tpu.memory_space<vmem>>, vector<8x256xf32>
    tpu.vector_store %arg4[%c0_7, %c0_8], %9 {strides = array<i32>} : memref<8x256xf32, #tpu.memory_space<vmem>>, vector<8x256xf32>,
    return
  }
  func.func @transform_0(%arg0: i32) -> (i32, i32) {
    %c0_i32 = arith.constant 0 : i32
    %c0_i32_0 = arith.constant 0 : i32
    return %arg0, %c0_i32 : i32, i32
  }
  func.func @transform_1(%arg0: i32) -> (i32, i32) {
    %c0_i32 = arith.constant 0 : i32
    %c0_i32_0 = arith.constant 0 : i32
    %c0_i32_1 = arith.constant 0 : i32
    return %c0_i32, %c0_i32_0 : i32, i32
  }
  func.func @transform_2(%arg0: i32) -> (i32, i32) {
    %c0_i32 = arith.constant 0 : i32
    %c0_i32_0 = arith.constant 0 : i32
    %c0_i32_1 = arith.constant 0 : i32
    return %c0_i32, %c0_i32_0 : i32, i32
  }
  func.func @transform_3(%arg0: i32) -> (i32, i32) {
    %c0_i32 = arith.constant 0 : i32
    %c0_i32_0 = arith.constant 0 : i32
    return %arg0, %c0_i32 : i32, i32
  }
}

</mosaic_0001>

<llo_original>
// kernel: tpu_custom_call.1
$region0: #{tpu_custom_call.1}
  #allocation0 [shape = 'u32[]', space=smem, size = 0x4, offset = 0x4, fixed_abs, tag = 'smem constant byte address 0x4 - core index']
  #allocation1 [shape = 'u32[144,128]{1,0:T(1,128)}', space=vmem, size = 0x12000, scoped, tag = 'internal scratch']
  %s0 = inlined_call_operand.hbm [shape: f32[16,128], index: 0, kind: input, shape index: {}]
  %s1 = inlined_call_operand.hbm [shape: f32[256,128], index: 1, kind: input, shape index: {}]
  %s2 = inlined_call_operand.vmem [shape: f32[1,256], index: 2, kind: input, shape index: {}]
  %s3 = inlined_call_operand.hbm [shape: f32[16,256], index: 3, kind: output, shape index: {}]
  %s4 = sld [smem:[#allocation0]]
  $region53: #{tpu_custom_call.1} parent=0
    _
  %s6 = ssub.s32 1, %s4
  %s7 = scalar_select 0, %s6, %s4
  $region1: #{tpu_custom_call.1} parent=0
    #allocation2 [shape = 'u8[8192]{0}', space=vmem, size = 0x2000, scoped, tag = 'input window, operand 0']
    #allocation3 [shape = 's32[2]{0}', space=sflag, size = 0x8, scoped, tag = 'scoped memory for tpu_custom_call.1']
    #allocation4 [shape = 's32[2]{0}', space=sflag, size = 0x8, scoped, tag = 'scoped memory for tpu_custom_call.1']
    #allocation5 [shape = 'u8[131072]{0}', space=vmem, size = 0x20000, scoped, tag = 'input window, operand 1, single buffered']
    #allocation6 [shape = 's32[1]{0}', space=sflag, size = 0x4, scoped, tag = 'scoped memory for tpu_custom_call.1']
    #allocation7 [shape = 'u8[16384]{0}', space=vmem, size = 0x4000, scoped, tag = 'output window, operand 0']
    %8 = vsyncpa [#allocation3], 0
    %s9 = scalar_lea.sflag [#allocation3], 1
    %10 = vsyncpa %s9, 0
    %11 = vsyncpa [#allocation6], 0
    %12 = vsyncpa [#allocation4], 0
    %s13 = scalar_lea.sflag [#allocation4], 1
    %14 = vsyncpa %s13, 0
    loop: start=0, step=1, limit=4
    $region2: #{tpu_custom_call.1} parent=1 // loop_pre_header
      _
    $region3: #{tpu_custom_call.1} parent=1 // loop_header
      %s16 = sphi 0, %s20
      %p17 = scmp.ge.s32.totalorder %s16, 4
      %s26 = sphi 0, %s28
      %s29 = sphi 0, %s26
      %s30 = sphi 0, %s29
      %s46 = sphi 0, %s30
      %s50 = sphi 0, %s50
      %s52 = sphi 0, %s50
      %s53 = sphi 0, %s52
      %s67 = sphi 0, %s53
      %s71 = sphi 0, %s71
      %s73 = sphi 0, %s71
      %s74 = sphi 0, %s73
      %s88 = sphi 0, %s74
      %s94 = sphi 0, %s96
      %s97 = sphi 0, %s94
      %s98 = sphi 0, %s97
      %s114 = sphi 0, %s98
    $region4: #{tpu_custom_call.1} parent=1 // loop_header_branch
      %19 = sbr.rel (%p17) target = $region8
    $region5: #{tpu_custom_call.1} parent=1 // loop_body
      %s21 = ssub.s32 %s16, 1
      %s22 = ssub.s32 %s16, 2
      %s23 = sadd.s32 %s16, 1
      %s24 = ssub.s32 %s16, %s23
      %p25 = scmp.eq.s32.totalorder %s24, 0
      %s27 = sadd.s32 %s26, 1
      %s28 = scalar_select %p25, %s26, %s27
      %p31 = pneg %p25
      %p32 = scmp.eq.s32.totalorder %s16, 1
      %p33 = por %p31, %p32
      %p34 = scmp.ne.s32.totalorder %s26, %s29
      %p35 = scmp.eq.s32.totalorder %s16, 0
      %p36 = por %p34, %p35
      %p37 = scmp.ne.s32.totalorder %s26, %s29
      %p38 = scmp.eq.s32.totalorder %s21, 1
      %p39 = por %p37, %p38
      %p40 = scmp.ne.s32.totalorder %s29, %s30
      %p41 = scmp.eq.s32.totalorder %s21, 0
      %p42 = por %p40, %p41
      %p43 = scmp.ne.s32.totalorder %s29, %s30
      %p44 = scmp.eq.s32.totalorder %s22, 1
      %p45 = por %p43, %p44
      %p47 = scmp.ne.s32.totalorder %s30, %s46
      %p48 = scmp.eq.s32.totalorder %s22, 0
      %p49 = por %p47, %p48
      %s51 = sadd.s32 %s50, 1
      %p54 = scmp.eq.s32.totalorder %s16, 1
      %p55 = scmp.ne.s32.totalorder %s50, %s52
      %p56 = scmp.eq.s32.totalorder %s16, 0
      %p57 = por %p55, %p56
      %p58 = scmp.ne.s32.totalorder %s50, %s52
      %p59 = scmp.eq.s32.totalorder %s21, 1
      %p60 = por %p58, %p59
      %p61 = scmp.ne.s32.totalorder %s52, %s53
      %p62 = scmp.eq.s32.totalorder %s21, 0
      %p63 = por %p61, %p62
      %p64 = scmp.ne.s32.totalorder %s52, %s53
      %p65 = scmp.eq.s32.totalorder %s22, 1
      %p66 = por %p64, %p65
      %p68 = scmp.ne.s32.totalorder %s53, %s67
      %p69 = scmp.eq.s32.totalorder %s22, 0
      %p70 = por %p68, %p69
      %s72 = sadd.s32 %s71, 1
      %p75 = scmp.eq.s32.totalorder %s16, 1
      %p76 = scmp.ne.s32.totalorder %s71, %s73
      %p77 = scmp.eq.s32.totalorder %s16, 0
      %p78 = por %p76, %p77
      %p79 = scmp.ne.s32.totalorder %s71, %s73
      %p80 = scmp.eq.s32.totalorder %s21, 1
      %p81 = por %p79, %p80
      %p82 = scmp.ne.s32.totalorder %s73, %s74
      %p83 = scmp.eq.s32.totalorder %s21, 0
      %p84 = por %p82, %p83
      %p85 = scmp.ne.s32.totalorder %s73, %s74
      %p86 = scmp.eq.s32.totalorder %s22, 1
      %p87 = por %p85, %p86
      %p89 = scmp.ne.s32.totalorder %s74, %s88
      %p90 = scmp.eq.s32.totalorder %s22, 0
      %p91 = por %p89, %p90
      %s92 = ssub.s32 %s16, %s23
      %p93 = scmp.eq.s32.totalorder %s92, 0
      %s95 = sadd.s32 %s94, 1
      %s96 = scalar_select %p93, %s94, %s95
      %p99 = pneg %p93
      %p100 = scmp.eq.s32.totalorder %s16, 1
      %p101 = por %p99, %p100
      %p102 = scmp.ne.s32.totalorder %s94, %s97
      %p103 = scmp.eq.s32.totalorder %s16, 0
      %p104 = por %p102, %p103
      %p105 = scmp.ne.s32.totalorder %s94, %s97
      %p106 = scmp.eq.s32.totalorder %s21, 1
      %p107 = por %p105, %p106
      %p108 = scmp.ne.s32.totalorder %s97, %s98
      %p109 = scmp.eq.s32.totalorder %s21, 0
      %p110 = por %p108, %p109
      %p111 = scmp.ne.s32.totalorder %s97, %s98
      %p112 = scmp.eq.s32.totalorder %s22, 1
      %p113 = por %p111, %p112
      %p115 = scmp.ne.s32.totalorder %s98, %s114
      %p116 = scmp.eq.s32.totalorder %s22, 0
      %p117 = por %p115, %p116
      %p118 = scmp.le.s32.totalorder 1, %s16
      %p119 = scmp.lt.s32.totalorder %s16, 3
      %p120 = pnand %p118, %p119
      %p121 = pneg %p120
      // Predicated region
      $region9: #{tpu_custom_call.1} parent=5 // pred_check
        _
      $region10: #{tpu_custom_call.1} parent=5 // pred_check_branch
        %123 = sbr.rel (%p120) target = $region12
      $region11: #{tpu_custom_call.1} parent=5 // pred_region
        %s124 = ssub.s32 %s16, 1
        // Predicated region
        $region13: #{tpu_custom_call.1} parent=11 // pred_check
          %p125 = pneg %p63
        $region14: #{tpu_custom_call.1} parent=11 // pred_check_branch
          %127 = sbr.rel (%p125) target = $region16
        $region15: #{tpu_custom_call.1} parent=11 // pred_region
          %s129 = ssub.s32 4096, 4096
          %130 = vsyncadd [#allocation6], %s129
          %s131 = sshll.u32 [#allocation5], 4
          %s132 = int_to_ptr.vmem [resolvable:$true] %s131
          %137 = dma.hbm_to_vmem [thread:$0]  %s1, 4096, %s132, [#allocation6], 128, 128, 8
        $region16: #{tpu_custom_call.1} parent=11 // pred_fallthru
          _
        // Predicated region
        $region17: #{tpu_custom_call.1} parent=11 // pred_check
          %p138 = pneg %p84
        $region18: #{tpu_custom_call.1} parent=11 // pred_check_branch
          %140 = sbr.rel (%p138) target = $region20
        $region19: #{tpu_custom_call.1} parent=11 // pred_region
          _
        $region20: #{tpu_custom_call.1} parent=11 // pred_fallthru
          _
      $region12: #{tpu_custom_call.1} parent=5 // pred_fallthru
        _
      %p141 = scmp.lt.s32.totalorder %s16, 2
      // Predicated region
      $region21: #{tpu_custom_call.1} parent=5 // pred_check
        %p142 = pneg %p141
      $region22: #{tpu_custom_call.1} parent=5 // pred_check_branch
        %144 = sbr.rel (%p142) target = $region24
      $region23: #{tpu_custom_call.1} parent=5 // pred_region
        // Predicated region
        $region25: #{tpu_custom_call.1} parent=23 // pred_check
          %p145 = pneg %p36
        $region26: #{tpu_custom_call.1} parent=23 // pred_check_branch
          %147 = sbr.rel (%p145) target = $region28
        $region27: #{tpu_custom_call.1} parent=23 // pred_region
          %s148 = sand.u32 %s26, 1
          %s149 = scalar_lea.sflag [#allocation3], %s148
          %s150 = sand.u32 %s26, 1
          %s151 = smul.addr %s150, 8
          %s152 = scalar_lea.vmem [#allocation2], %s151
          %s154 = ssub.s32 128, 128
          %155 = vsyncadd %s149, %s154
          %s156 = smul.addr %s16, 128
          %s157 = scalar_lea.hbm %s0, %s156
          %s159 = sshll.u32 %s152, 4
          %s160 = int_to_ptr.vmem [resolvable:$true] %s159
          %162 = dma.hbm_to_vmem [thread:$0]  %s157, 128, %s160, %s149
        $region28: #{tpu_custom_call.1} parent=23 // pred_fallthru
          _
      $region24: #{tpu_custom_call.1} parent=5 // pred_fallthru
        _
      %p163 = scmp.le.s32.totalorder 1, %s16
      %p164 = scmp.lt.s32.totalorder %s16, 3
      %p165 = pnand %p163, %p164
      %p166 = pneg %p165
      // Predicated region
      $region29: #{tpu_custom_call.1} parent=5 // pred_check
        _
      $region30: #{tpu_custom_call.1} parent=5 // pred_check_branch
        %168 = sbr.rel (%p165) target = $region32
      $region31: #{tpu_custom_call.1} parent=5 // pred_region
        %s169 = ssub.s32 %s16, 1
        %s170 = sand.u32 %s29, 1
        %s171 = scalar_lea.sflag [#allocation3], %s170
        %s172 = sand.u32 %s29, 1
        %s173 = smul.addr %s172, 8
        %s174 = scalar_lea.vmem [#allocation2], %s173
        // Predicated region
        $region33: #{tpu_custom_call.1} parent=31 // pred_check
          %p175 = pneg %p42
        $region34: #{tpu_custom_call.1} parent=31 // pred_check_branch
          %177 = sbr.rel (%p175) target = $region36
        $region35: #{tpu_custom_call.1} parent=31 // pred_region
          %178 = dma.done %s171, 128
        $region36: #{tpu_custom_call.1} parent=31 // pred_fallthru
          _
        // Predicated region
        $region37: #{tpu_custom_call.1} parent=31 // pred_check
          %p179 = pneg %p63
        $region38: #{tpu_custom_call.1} parent=31 // pred_check_branch
          %181 = sbr.rel (%p179) target = $region40
        $region39: #{tpu_custom_call.1} parent=31 // pred_region
          %182 = dma.done [#allocation6], 4096
        $region40: #{tpu_custom_call.1} parent=31 // pred_fallthru
          _
        %s183 = sand.u32 %s29, 1
        %s184 = scalar_lea.sflag [#allocation3], %s183
        %s185 = sand.u32 %s29, 1
        %s186 = smul.addr %s185, 8
        %s187 = scalar_lea.vmem [#allocation2], %s186
        %p188 = pneg %p42
        %p189 = pneg %p39
        %p190 = pneg %p63
        %p191 = pneg %p60
        %p192 = pneg %p84
        %p193 = pneg %p81
        %p194 = pneg %p110
        %p195 = pneg %p107
        %s196 = sand.u32 %s97, 1
        %s197 = scalar_lea.sflag [#allocation4], %s196
        %s198 = sand.u32 %s97, 1
        %s199 = smul.addr %s198, 16
        %s200 = scalar_lea.vmem [#allocation7], %s199
        %v201 = vld [vmem:[%s174] sm:$0xff]
        %v202 = vld [vmem:[#allocation5] sm:$0xff]
        %v203 = vld [vmem:[#allocation5 + $0x8] sm:$0xff]
        %v204 = vld [vmem:[#allocation5 + $0x10] sm:$0xff]
        %v205 = vld [vmem:[#allocation5 + $0x18] sm:$0xff]
        %v206 = vld [vmem:[#allocation5 + $0x20] sm:$0xff]
        %v207 = vld [vmem:[#allocation5 + $0x28] sm:$0xff]
        %v208 = vld [vmem:[#allocation5 + $0x30] sm:$0xff]
        %v209 = vld [vmem:[#allocation5 + $0x38] sm:$0xff]
        %v210 = vld [vmem:[#allocation5 + $0x40] sm:$0xff]
        %v211 = vld [vmem:[#allocation5 + $0x48] sm:$0xff]
        %v212 = vld [vmem:[#allocation5 + $0x50] sm:$0xff]
        %v213 = vld [vmem:[#allocation5 + $0x58] sm:$0xff]
        %v214 = vld [vmem:[#allocation5 + $0x60] sm:$0xff]
        %v215 = vld [vmem:[#allocation5 + $0x68] sm:$0xff]
        %v216 = vld [vmem:[#allocation5 + $0x70] sm:$0xff]
        %v217 = vld [vmem:[#allocation5 + $0x78] sm:$0xff]
        %v218 = vld [vmem:[#allocation5 + $0x80] sm:$0xff]
        %v219 = vld [vmem:[#allocation5 + $0x88] sm:$0xff]
        %v220 = vld [vmem:[#allocation5 + $0x90] sm:$0xff]
        %v221 = vld [vmem:[#allocation5 + $0x98] sm:$0xff]
        %v222 = vld [vmem:[#allocation5 + $0xa0] sm:$0xff]
        %v223 = vld [vmem:[#allocation5 + $0xa8] sm:$0xff]
        %v224 = vld [vmem:[#allocation5 + $0xb0] sm:$0xff]
        %v225 = vld [vmem:[#allocation5 + $0xb8] sm:$0xff]
        %v226 = vld [vmem:[#allocation5 + $0xc0] sm:$0xff]
        %v227 = vld [vmem:[#allocation5 + $0xc8] sm:$0xff]
        %v228 = vld [vmem:[#allocation5 + $0xd0] sm:$0xff]
        %v229 = vld [vmem:[#allocation5 + $0xd8] sm:$0xff]
        %v230 = vld [vmem:[#allocation5 + $0xe0] sm:$0xff]
        %v231 = vld [vmem:[#allocation5 + $0xe8] sm:$0xff]
        %v232 = vld [vmem:[#allocation5 + $0xf0] sm:$0xff]
        %v233 = vld [vmem:[#allocation5 + $0xf8] sm:$0xff]
        %v234 = vld [vmem:[%s2] sm:$0x3]
        %v236 = vlaneseq
        %v237 = vshrl.u32 %v236, 7
        %v238 = vsub.s32 0, %v237
        %v239 = vrot.slane %v234, %v238
        %v240 = vlaneseq
        %v241 = vshrl.u32 %v240, 7
        %v242 = vsub.s32 1, %v241
        %v243 = vrot.slane %v234, %v242
        %246 = vmatprep.subr.mxu0 0.0
        %247 = vmatpush1.xpose.msra.mxu0 %v202
        %248 = vmatprep.subr.mxu0 0.0
        %249 = vmatpush1.xpose.msra.mxu0 %v203
        %250 = vmatprep.subr.mxu0 0.0
        %251 = vmatpush1.xpose.msra.mxu0 %v204
        %252 = vmatprep.subr.mxu0 0.0
        %253 = vmatpush1.xpose.msra.mxu0 %v205
        %254 = vmatprep.subr.mxu0 0.0
        %255 = vmatpush1.xpose.msra.mxu0 %v206
        %256 = vmatprep.subr.mxu0 0.0
        %257 = vmatpush1.xpose.msra.mxu0 %v207
        %258 = vmatprep.subr.mxu0 0.0
        %259 = vmatpush1.xpose.msra.mxu0 %v208
        %260 = vmatprep.subr.mxu0 0.0
        %261 = vmatpush1.xpose.msra.mxu0 %v209
        %262 = vmatprep.subr.mxu0 0.0
        %263 = vmatpush1.xpose.msra.mxu0 %v210
        %264 = vmatprep.subr.mxu0 0.0
        %265 = vmatpush1.xpose.msra.mxu0 %v211
        %266 = vmatprep.subr.mxu0 0.0
        %267 = vmatpush1.xpose.msra.mxu0 %v212
        %268 = vmatprep.subr.mxu0 0.0
        %269 = vmatpush1.xpose.msra.mxu0 %v213
        %270 = vmatprep.subr.mxu0 0.0
        %271 = vmatpush1.xpose.msra.mxu0 %v214
        %272 = vmatprep.subr.mxu0 0.0
        %273 = vmatpush1.xpose.msra.mxu0 %v215
        %274 = vmatprep.subr.mxu0 0.0
        %275 = vmatpush1.xpose.msra.mxu0 %v216
        %276 = vmatprep.subr.mxu0 0.0
        %277 = vmatpush1.xpose.msra.mxu0 %v217
        %278 = vmatprep.subr.mxu0 0.0
        %279 = vmatpush1.xpose.msra.mxu0 %v218
        %280 = vmatprep.subr.mxu0 0.0
        %281 = vmatpush1.xpose.msra.mxu0 %v219
        %282 = vmatprep.subr.mxu0 0.0
        %283 = vmatpush1.xpose.msra.mxu0 %v220
        %284 = vmatprep.subr.mxu0 0.0
        %285 = vmatpush1.xpose.msra.mxu0 %v221
        %286 = vmatprep.subr.mxu0 0.0
        %287 = vmatpush1.xpose.msra.mxu0 %v222
        %288 = vmatprep.subr.mxu0 0.0
        %289 = vmatpush1.xpose.msra.mxu0 %v223
        %290 = vmatprep.subr.mxu0 0.0
        %291 = vmatpush1.xpose.msra.mxu0 %v224
        %292 = vmatprep.subr.mxu0 0.0
        %293 = vmatpush1.xpose.msra.mxu0 %v225
        %294 = vmatprep.subr.mxu0 0.0
        %295 = vmatpush1.xpose.msra.mxu0 %v226
        %296 = vmatprep.subr.mxu0 0.0
        %297 = vmatpush1.xpose.msra.mxu0 %v227
        %298 = vmatprep.subr.mxu0 0.0
        %299 = vmatpush1.xpose.msra.mxu0 %v228
        %300 = vmatprep.subr.mxu0 0.0
        %301 = vmatpush1.xpose.msra.mxu0 %v229
        %302 = vmatprep.subr.mxu0 0.0
        %303 = vmatpush1.xpose.msra.mxu0 %v230
        %304 = vmatprep.subr.mxu0 0.0
        %305 = vmatpush1.xpose.msra.mxu0 %v231
        %306 = vmatprep.subr.mxu0 0.0
        %307 = vmatpush1.xpose.msra.mxu0 %v232
        %308 = vmatprep.subr.mxu0 0.0
        %309 = vmatpush1.xpose.msra.mxu0 %v233
        %310 = vmatprep.mubr.f32.mxu0 0.0
        %311 = vmatmul.mubr.f32.gmra.mrb[0].mxu0 %v201
        %v312 = vpop.f32.mrb[0].mxu0
        %v313 = vadd.f32 %v239, %v312
        %v314 = vpop.f32.mrb[0].mxu0
        %v315 = vadd.f32 %v243, %v314
        %316 = vdwg.mxu0
        %v317 = vmin.f32 %v313, 1.0
        %v318 = vmin.f32 %v315, 1.0
        %v319 = vadd.f32 %v317, 1.0
        %v320 = vadd.f32 %v318, 1.0
        %321 = vst [vmem:[%s200] sm:$0xff] %v319
        %322 = vst [vmem:[%s200 + $0x8] sm:$0xff] %v320
        %s323 = sand.u32 %s97, 1
        %s324 = scalar_lea.sflag [#allocation4], %s323
        %s325 = sand.u32 %s97, 1
        %s326 = smul.addr %s325, 16
        %s327 = scalar_lea.vmem [#allocation7], %s326
        // Predicated region
        $region41: #{tpu_custom_call.1} parent=31 // pred_check
          %p328 = pneg %p107
        $region42: #{tpu_custom_call.1} parent=31 // pred_check_branch
          %330 = sbr.rel (%p328) target = $region44
        $region43: #{tpu_custom_call.1} parent=31 // pred_region
          %s332 = ssub.s32 256, 256
          %333 = vsyncadd %s324, %s332
          %s334 = smul.addr %s21, 2
          %s335 = smul.addr %s334, 128
          %s336 = scalar_lea.hbm %s3, %s335
          %s338 = sshll.u32 %s327, 4
          %s339 = int_to_ptr.vmem [resolvable:$true] %s338
          %341 = dma.vmem_to_hbm [thread:$0]  %s339, 256, %s336, %s324
        $region44: #{tpu_custom_call.1} parent=31 // pred_fallthru
          _
      $region32: #{tpu_custom_call.1} parent=5 // pred_fallthru
        _
      %p342 = scmp.le.s32.totalorder 2, %s16
      // Predicated region
      $region45: #{tpu_custom_call.1} parent=5 // pred_check
        %p343 = pneg %p342
      $region46: #{tpu_custom_call.1} parent=5 // pred_check_branch
        %345 = sbr.rel (%p343) target = $region48
      $region47: #{tpu_custom_call.1} parent=5 // pred_region
        %s346 = ssub.s32 %s16, 2
        // Predicated region
        $region49: #{tpu_custom_call.1} parent=47 // pred_check
          %p347 = pneg %p113
        $region50: #{tpu_custom_call.1} parent=47 // pred_check_branch
          %349 = sbr.rel (%p347) target = $region52
        $region51: #{tpu_custom_call.1} parent=47 // pred_region
          %s350 = sand.u32 %s98, 1
          %s351 = scalar_lea.sflag [#allocation4], %s350
          %s352 = sand.u32 %s98, 1
          %s353 = smul.addr %s352, 16
          %s354 = scalar_lea.vmem [#allocation7], %s353
          %355 = dma.done %s351, 256
        $region52: #{tpu_custom_call.1} parent=47 // pred_fallthru
          _
      $region48: #{tpu_custom_call.1} parent=5 // pred_fallthru
        _
    $region6: #{tpu_custom_call.1} parent=1 // loop_footer
      %s20 = sadd.s32 1, %s16
    $region7: #{tpu_custom_call.1} parent=1 // loop_footer_branch
      %15 = sbr.rel target = $region3
    $region8: #{tpu_custom_call.1} parent=1 // loop_exit
      _
    %356 = vsyncpa [#allocation3], 1
    %s357 = scalar_lea.sflag [#allocation3], 1
    %358 = vsyncpa %s357, 1
    %359 = vsyncpa [#allocation6], 1
    %360 = vsyncpa [#allocation4], 1
    %s361 = scalar_lea.sflag [#allocation4], 1
    %362 = vsyncpa %s361, 1

</llo_original>
